<compile_context>
chip_gen: v7x
topology: tpu7x:2x2x1
jax: 0.10.0
libtpu: 0.0.40
codegen_flags: <defaults>
</compile_context>

<pallas_src>
import functools
import numpy as np
import jax
import jax.numpy as jnp
from jax import lax
from jax.experimental import pallas as pl
from jax.experimental.pallas import tpu as pltpu

# 48 MiB: below v7x's 64 MiB physical VMEM, generous headroom on v5e/v6e
# (128 MiB).  The tile sizes chosen below use well under this budget.
_VMEM_LIMIT = 48 * 1024 * 1024


# ----------------------------- helpers --------------------------------------

def _gelu_new(x):
    # HF "gelu_new" (tanh approximation) -- assumed config.activation_function
    return 0.5 * x * (1.0 + jnp.tanh(np.sqrt(2.0 / np.pi) *
                                     (x + 0.044715 * x * x * x)))


def _pick_tile(dim, candidates):
    """Largest candidate that evenly divides `dim`, else the full dim."""
    for c in candidates:
        if dim % c == 0:
            return c
    return dim


def _qkv_out_perm(E, H):
    """Column permutation so qkv_proj output reshapes freely to (B,S,3,H,D).

    Maps desired column p = which*E + h*D + d to the original mp_num=8
    grouped column produced by the reference qkv split.
    """
    mp = 8
    local = E // mp
    perm = np.empty(3 * E, np.int64)
    for which in range(3):
        for flat in range(E):
            g, within = divmod(flat, local)
            perm[which * E + flat] = g * (3 * local) + which * local + within
    return perm


# ----------------------------- tiled linear (MXU) ----------------------------

def _matmul_kernel(*refs, has_bias, activation, num_extras):
    # refs: x_ref, w_ref, [b_ref], *extra_refs, o_ref, acc_ref
    x_ref, w_ref = refs[0], refs[1]
    pos = 2
    b_ref = None
    if has_bias:
        b_ref = refs[pos]
        pos += 1
    extra_refs = refs[pos:pos + num_extras]
    pos += num_extras
    o_ref = refs[pos]
    acc_ref = refs[pos + 1]

    k = pl.program_id(2)

    @pl.when(k == 0)
    def _():
        acc_ref[...] = jnp.zeros_like(acc_ref)

    # y_tile += x_tile @ w_tile  (weights pre-transposed to (K, N) once in the
    # wrapper -> plain contraction, no per-tile XLU transposes; operands stay
    # in their native dtype -> bf16 MXU when inputs are bf16, f32 accumulate).
    acc_ref[...] += jnp.dot(x_ref[...], w_ref[...],
                            preferred_element_type=jnp.float32)

    @pl.when(k == pl.num_programs(2) - 1)
    def _():
        y = acc_ref[...]
        if has_bias:
            y = y + b_ref[...].astype(jnp.float32)
        if activation == "gelu_new":
            y = _gelu_new(y)
        for e_ref in extra_refs:            # fused residual / attention adds
            y = y + e_ref[...].astype(jnp.float32)
        o_ref[...] = y.astype(o_ref.dtype)


def matmul_pallas(x, w_kn, b=None, activation="none", extras=()):
    """y = x @ w_kn (+ b) (+ sum(extras)); w_kn already in (K, N) layout.

    Tiled over (M/tm, N/tn, K/tk), K innermost, f32 VMEM accumulator; bias,
    activation and residual adds are fused into the K-finalize epilogue.
    """
    M, K = x.shape
    K2, N = w_kn.shape
    assert K == K2, (x.shape, w_kn.shape)

    tm = _pick_tile(M, (512, 256, 128, 64, 32, 16, 8))
    tn = _pick_tile(N, (512, 256, 128))
    tk = _pick_tile(K, (1024, 512, 256, 128))
    grid = (M // tm, N // tn, K // tk)

    has_bias = b is not None
    in_specs = [pl.BlockSpec((tm, tk), lambda i, j, k: (i, k)),
                pl.BlockSpec((tk, tn), lambda i, j, k: (k, j))]
    inputs = [x, w_kn]
    if has_bias:
        in_specs.append(pl.BlockSpec((1, tn), lambda i, j, k: (0, j)))
        inputs.append(jnp.asarray(b).reshape(1, N))
    for e in extras:
        in_specs.append(pl.BlockSpec((tm, tn), lambda i, j, k: (i, j)))
        inputs.append(e)

    kernel = functools.partial(_matmul_kernel, has_bias=has_bias,
                               activation=activation, num_extras=len(extras))
    return pl.pallas_call(
        kernel,
        out_shape=jax.ShapeDtypeStruct((M, N), x.dtype),
        grid=grid,
        in_specs=in_specs,
        out_specs=pl.BlockSpec((tm, tn), lambda i, j, k: (i, j)),
        scratch_shapes=[pltpu.VMEM((tm, tn), jnp.float32)],
        compiler_params=pltpu.CompilerParams(
            dimension_semantics=("parallel", "parallel", "arbitrary"),
            vmem_limit_bytes=_VMEM_LIMIT),
    )(*inputs)


# ----------------------------- flash attention kernel ------------------------

def _flash_attn_kernel(*refs, inv_scale, use_roll):
    if use_roll:
        (q_ref, k_ref, v_ref,
         cos_q, sa_q, sb_q, cos_k, sa_k, sb_k,
         o_ref, qrot_ref, m_ref, l_ref, acc_ref) = refs
        rot_ref = None
    else:
        (q_ref, k_ref, v_ref,
         cos_q, sa_q, sb_q, cos_k, sa_k, sb_k, rot_ref,
         o_ref, qrot_ref, m_ref, l_ref, acc_ref) = refs

    qi = pl.program_id(2)
    ki = pl.program_id(3)
    nk = pl.num_programs(3)

    tq = q_ref.shape[-2]
    tkv = k_ref.shape[-2]
    d = q_ref.shape[-1]

    def rope(x, cos, sa, sb):
        if use_roll:
            # rotate_every_two as pure elementwise + XLU rolls (no MXU work):
            #   out[2i] = -x[2i+1]*sin ; out[2i+1] = x[2i]*sin
            left = pltpu.roll(x, d - 1, 1)     # x[:, (j+1) % d]
            right = pltpu.roll(x, 1, 1)        # x[:, (j-1) % d]
            return x * cos + left * sa + right * sb
        # Small / lane-unaligned head_dim: rotate_every_two as a tiny (D, D)
        # signed-permutation matmul (robust lowering; negligible at small D).
        sin_full = sb - sa
        rot = jnp.dot(x.astype(jnp.float32), rot_ref[...],
                      preferred_element_type=jnp.float32).astype(x.dtype)
        return x * cos + rot * sin_full

    # Tile is not fully masked iff its first KV column can be attended to by
    # the last query row of this q block.
    visible = ki * tkv <= qi * tq + (tq - 1)

    @pl.when(visible)
    def _():
        @pl.when(ki == 0)
        def _():
            # Rotate + scale q once per q block; reuse across all KV tiles.
            qf = q_ref[0, 0, 0]                                # (tq, D)
            qr = rope(qf, cos_q[...], sa_q[...], sb_q[...]) * inv_scale
            qrot_ref[...] = qr.astype(qrot_ref.dtype)
            m_ref[...] = jnp.full(m_ref.shape, -jnp.inf, m_ref.dtype)
            l_ref[...] = jnp.zeros_like(l_ref)
            acc_ref[...] = jnp.zeros_like(acc_ref)

        kf = k_ref[0, 0, 0]                                    # (tkv, D)
        vf = v_ref[0, 0, 0]
        kr = rope(kf, cos_k[...], sa_k[...], sb_k[...]).astype(kf.dtype)

        s = lax.dot_general(qrot_ref[...], kr,
                            dimension_numbers=(((1,), (1,)), ((), ())),
                            preferred_element_type=jnp.float32)  # (tq, tkv)

        # Per-tile causal mask from small iotas (no (S,S) temporaries).
        row = qi * tq + lax.broadcasted_iota(jnp.int32, (tq, tkv), 0)
        col = ki * tkv + lax.broadcasted_iota(jnp.int32, (tq, tkv), 1)
        s = jnp.where(col <= row, s, jnp.float32(-1e9))

        m_prev = m_ref[...]
        m_new = jnp.maximum(m_prev, jnp.max(s, axis=-1, keepdims=True))
        alpha = jnp.exp(m_prev - m_new)
        p = jnp.exp(s - m_new)
        l_ref[...] = alpha * l_ref[...] + jnp.sum(p, axis=-1, keepdims=True)
        acc_ref[...] = alpha * acc_ref[...] + jnp.dot(
            p.astype(vf.dtype), vf, preferred_element_type=jnp.float32)
        m_ref[...] = m_new

    @pl.when(ki == nk - 1)
    def _():
        # Normalize AFTER PV: one (tq, D) scale with the EUP reciprocal.
        o = acc_ref[...] * pl.reciprocal(l_ref[...], approx=True)
        o_ref[0, 0] = o.astype(o_ref.dtype)


def attention_pallas(qkv_t, cos_t, sin_a, sin_b, rot_mat, *, inv_scale):
    """Causal flash attention.

    qkv_t: (3, B, H, S, D) -- q / k / v stacked along axis 0 (DMA'd straight
    out of the permuted qkv projection).  Returns (B, H, S, D).
    """
    _, B, H, S, D = qkv_t.shape
    tq = _pick_tile(S, (256, 128, 64, 32, 16, 8))
    tkv = _pick_tile(S, (512, 256, 128, 64, 32, 16, 8))
    nq, nk = S // tq, S // tkv
    use_roll = (D % 128 == 0)

    def ki_clamped(qi, ki):
        # Clamp masked KV steps onto the last useful block so Pallas issues
        # no DMA for skipped tiles (block index unchanged => no copy).
        return jnp.minimum(ki, (qi * tq + tq - 1) // tkv)

    q_spec = pl.BlockSpec((1, 1, 1, tq, D),
                          lambda b, h, qi, ki: (0, b, h, qi, 0))
    k_spec = pl.BlockSpec((1, 1, 1, tkv, D),
                          lambda b, h, qi, ki: (1, b, h, ki_clamped(qi, ki), 0))
    v_spec = pl.BlockSpec((1, 1, 1, tkv, D),
                          lambda b, h, qi, ki: (2, b, h, ki_clamped(qi, ki), 0))
    tab_q = pl.BlockSpec((tq, D), lambda b, h, qi, ki: (qi, 0))
    tab_k = pl.BlockSpec((tkv, D),
                         lambda b, h, qi, ki: (ki_clamped(qi, ki), 0))

    in_specs = [q_spec, k_spec, v_spec, tab_q, tab_q, tab_q, tab_k, tab_k,
                tab_k]
    inputs = [qkv_t, qkv_t, qkv_t, cos_t, sin_a, sin_b, cos_t, sin_a, sin_b]
    if not use_roll:
        in_specs.append(pl.BlockSpec((D, D), lambda b, h, qi, ki: (0, 0)))
        inputs.append(rot_mat)

    kernel = functools.partial(_flash_attn_kernel, inv_scale=inv_scale,
                               use_roll=use_roll)
    return pl.pallas_call(
        kernel,
        out_shape=jax.ShapeDtypeStruct((B, H, S, D), qkv_t.dtype),
        grid=(B, H, nq, nk),
        in_specs=in_specs,
        out_specs=pl.BlockSpec((1, 1, tq, D),
                               lambda b, h, qi, ki: (b, h, qi, 0)),
        scratch_shapes=[
            pltpu.VMEM((tq, D), qkv_t.dtype),   # rotated + scaled q
            pltpu.VMEM((tq, 1), jnp.float32),   # running max m
            pltpu.VMEM((tq, 1), jnp.float32),   # running denom l
            pltpu.VMEM((tq, D), jnp.float32),   # unnormalized p@v accumulator
        ],
        compiler_params=pltpu.CompilerParams(
            dimension_semantics=("parallel", "parallel", "parallel",
                                 "arbitrary"),
            vmem_limit_bytes=_VMEM_LIMIT),
    )(*inputs)


# ----------------------------- rotary tables ---------------------------------

def _rope_tables(S, D, rot, dtype):
    inv_freq = 1.0 / (10000.0 ** (np.arange(0, rot, 2) / rot))
    sinusoid = np.einsum("i,j->ij", np.arange(S), inv_freq).astype(np.float32)
    sin = np.repeat(np.sin(sinusoid), 2, axis=1)                  # (S, rot)
    cos = np.repeat(np.cos(sinusoid), 2, axis=1)
    cos_full = np.concatenate([cos, np.ones((S, D - rot), np.float32)], 1)
    sin_full = np.concatenate([sin, np.zeros((S, D - rot), np.float32)], 1)
    even = (np.arange(D) % 2 == 0)[None, :]
    sin_a = np.where(even, -sin_full, 0.0)     # multiplies x[(j+1) % D]
    sin_b = np.where(even, 0.0, sin_full)      # multiplies x[(j-1) % D]
    rot_mat = np.zeros((D, D), np.float32)     # fallback rotate_every_two
    for i in range(D // 2):
        rot_mat[2 * i + 1, 2 * i] = -1.0
        rot_mat[2 * i, 2 * i + 1] = 1.0
    return (jnp.asarray(cos_full, dtype), jnp.asarray(sin_a, dtype),
            jnp.asarray(sin_b, dtype), jnp.asarray(rot_mat))


# ----------------------------- ProGenBlock forward --------------------------

def progen_block_pallas(hidden, params, cfg, ignore_length=None):
    # ignore_length is unused in the reference PyTorch forward as well.
    del ignore_length
    B, S, E = hidden.shape
    H = cfg["n_head"]
    D = E // H
    rot = cfg["rotary_dim"]
    rot = D if rot is None else rot

    x2d = hidden.reshape(B * S, E)

    # One-time weight layout transforms (negligible vs activations; in
    # production these are done once at load time):
    #   * transpose every weight to (K, N) so the kernel contracts plainly,
    #   * permute qkv_proj columns so the output is (3, H, D)-ordered and the
    #     head split is a free reshape (no wrapper slicing/copies).
    perm = _qkv_out_perm(E, H)
    w_qkv_kn = jnp.asarray(params["w_qkv"]).T[:, perm]        # (E, 3E)
    w_out_kn = jnp.asarray(params["w_out"]).T                 # (E, E)
    w_fc_in_kn = jnp.asarray(params["w_fc_in"]).T             # (E, inner)
    w_fc_out_kn = jnp.asarray(params["w_fc_out"]).T           # (inner, E)

    # ---- attention ----
    qkv2d = matmul_pallas(x2d, w_qkv_kn)                      # (B*S, 3E)
    # Free reshape (columns already (which, head, dim) ordered), then ONE
    # transpose to put (S, D) in the trailing dims for the attention kernel.
    qkv_t = qkv2d.reshape(B, S, 3, H, D).transpose(2, 0, 3, 1, 4)  # (3,B,H,S,D)

    # bf16 RoPE tables when activations are bf16 (v6e/v7x bf16 VPU); f32
    # otherwise.  (On v5e keep f32 activations -> f32 tables.)
    tab_dtype = hidden.dtype if hidden.dtype == jnp.bfloat16 else jnp.float32
    cos_t, sin_a, sin_b, rot_mat = _rope_tables(S, D, rot, tab_dtype)
    inv_scale = float(1.0 / np.sqrt(np.float32(D)))
    attn = attention_pallas(qkv_t, cos_t, sin_a, sin_b, rot_mat,
                            inv_scale=inv_scale)              # (B, H, S, D)
    attn2d = attn.transpose(0, 2, 1, 3).reshape(B * S, E)     # merge heads
    attn_proj = matmul_pallas(attn2d, w_out_kn)               # out_proj

    # ---- MLP + fused residual sum (attn + mlp + residual in one epilogue) ---
    h = matmul_pallas(x2d, w_fc_in_kn, params["b_fc_in"],
                      activation="gelu_new")
    out2d = matmul_pallas(h, w_fc_out_kn, params["b_fc_out"],
                          extras=(attn_proj, x2d))
    return out2d.reshape(B, S, E)


# ----------------------------- pure-JAX reference ----------------------------

def reference_forward(hidden, params, cfg):
    B, S, E = hidden.shape
    H = cfg["n_head"]
    D = E // H
    rot = cfg["rotary_dim"]
    residual = hidden

    qkv = hidden @ params["w_qkv"].T
    mp = 8
    local = E // mp
    qkv_split = qkv.reshape(B, S, mp, -1)
    q = qkv_split[..., :local]
    k = qkv_split[..., local:2 * local]
    v = qkv_split[..., 2 * local:3 * local]

    def split_heads(t):
        t = t.reshape(t.shape[:-2] + (-1,))
        return t.reshape(t.shape[:-1] + (H, D))

    q, k, v = split_heads(q), split_heads(k), split_heads(v)
    v = v.transpose(0, 2, 1, 3)

    k_rot, k_pass = k[..., :rot], k[..., rot:]
    q_rot, q_pass = q[..., :rot], q[..., rot:]
    inv_freq = 1.0 / (10000.0 ** (np.arange(0, rot, 2) / rot))
    sinusoid = np.einsum("i,j->ij", np.arange(S), inv_freq).astype(np.float32)
    sin, cos = np.sin(sinusoid), np.cos(sinusoid)

    def rotate_every_two(x):
        x1 = x[:, :, :, ::2]
        x2 = x[:, :, :, 1::2]
        xs = jnp.stack((-x2, x1), axis=-1)
        return xs.reshape(xs.shape[:-2] + (-1,))

    def apply_rope(x):
        s = jnp.repeat(jnp.asarray(sin)[None, :, None, :], 2, axis=3)
        c = jnp.repeat(jnp.asarray(cos)[None, :, None, :], 2, axis=3)
        return x * c + rotate_every_two(x) * s

    k_rot = apply_rope(k_rot)
    q_rot = apply_rope(q_rot)
    k = jnp.concatenate([k_rot, k_pass], axis=-1).transpose(0, 2, 1, 3)
    q = jnp.concatenate([q_rot, q_pass], axis=-1).transpose(0, 2, 1, 3)

    scale = np.sqrt(np.float32(D))
    scores = jnp.einsum("bhqd,bhkd->bhqk", q, k) / scale
    mask = np.tril(np.ones((S, S), bool))
    scores = jnp.where(mask[None, None], scores, jnp.float32(-1e9))
    w = jax.nn.softmax(scores, axis=-1)
    attn = jnp.einsum("bhqk,bhkd->bhqd", w, v)
    attn = attn.transpose(0, 2, 1, 3).reshape(B, S, E)
    attn = attn @ params["w_out"].T

    h = hidden @ params["w_fc_in"].T + params["b_fc_in"]
    h = _gelu_new(h)
    h = h @ params["w_fc_out"].T + params["b_fc_out"]
    return attn + h + residual


# ----------------------------- params / main ---------------------------------

def init_params(key, E, inner):
    ks = jax.random.split(key, 6)
    s = 0.05
    return {
        "w_qkv":    jax.random.normal(ks[0], (3 * E, E), jnp.float32) * s,
        "w_out":    jax.random.normal(ks[1], (E, E), jnp.float32) * s,
        "w_fc_in":  jax.random.normal(ks[2], (inner, E), jnp.float32) * s,
        "b_fc_in":  jax.random.normal(ks[3], (inner,), jnp.float32) * s,
        "w_fc_out": jax.random.normal(ks[4], (E, inner), jnp.float32) * s,
        "b_fc_out": jax.random.normal(ks[5], (E,), jnp.float32) * s,
    }


if __name__ == "__main__":
    # Small shapes consistent with the module: embed_dim=32, n_head=4,
    # head_dim=8, rotary_dim=4, n_inner=None -> inner=4*32=128.
    B, S, E, H = 2, 8, 32, 4
    rot = 4
    inner = 4 * E
    cfg = dict(n_head=H, rotary_dim=rot)

    key = jax.random.PRNGKey(0)
    kx, kp = jax.random.split(key)
    hidden = jax.random.normal(kx, (B, S, E), jnp.float32)
    params = init_params(kp, E, inner)

    out = progen_block_pallas(hidden, params, cfg, ignore_length=None)
    out = jax.block_until_ready(out)

    ref = reference_forward(hidden, params, cfg)
    # Tolerance relaxed vs exact: softmax uses the EUP approximate reciprocal.
    np.testing.assert_allclose(np.asarray(out), np.asarray(ref),
                               rtol=2e-3, atol=2e-3)
    print("KERNEL_OK")
</pallas_src>

<mosaic_0001>
module attributes {stable_mosaic.version = 11 : i64} {
  func.func @_matmul_kernel(%arg0: i32, %arg1: i32, %arg2: i32, %arg3: memref<16x32xf32, #tpu.memory_space<vmem>>, %arg4: memref<32x96xf32, #tpu.memory_space<vmem>>, %arg5: memref<16x96xf32, #tpu.memory_space<vmem>>, %arg6: memref<16x96xf32, #tpu.memory_space<vmem>>) attributes {dimension_semantics = [#tpu.dimension_semantics<parallel>, #tpu.dimension_semantics<parallel>, #tpu.dimension_semantics<arbitrary>], iteration_bounds = array<i64: 1, 1, 1>, scalar_prefetch = 0 : i64, scratch_operands = 1 : i64, tpu.core_type = #tpu.core_type<tc>, window_params = [{transform_indices = @transform_0, window_bounds = array<i64: 16, 32>}, {transform_indices = @transform_1, window_bounds = array<i64: 32, 96>}, {transform_indices = @transform_2, window_bounds = array<i64: 16, 96>}]} {
    %c0_i32 = arith.constant 0 : i32
    %0 = arith.cmpi eq, %arg2, %c0_i32 : i32
    %1 = arith.extui %0 : i1 to i32
    %c0_i32_0 = arith.constant 0 : i32
    %2 = arith.cmpi ne, %1, %c0_i32_0 : i32
    scf.if %2 {
      %cst_10 = arith.constant 0.000000e+00 : f32
      %12 = vector.broadcast %cst_10 : f32 to vector<16x96xf32>
      %c0_11 = arith.constant 0 : index
      %c0_12 = arith.constant 0 : index
      %13 = vector.load %arg6[%c0_11, %c0_12] : memref<16x96xf32, #tpu.memory_space<vmem>>, vector<16x96xf32>
      tpu.vector_store %arg6[%c0_11, %c0_12], %12 {strides = array<i32>} : memref<16x96xf32, #tpu.memory_space<vmem>>, vector<16x96xf32>,
    } else {
    }
    %c0 = arith.constant 0 : index
    %c0_1 = arith.constant 0 : index
    %3 = vector.load %arg6[%c0, %c0_1] : memref<16x96xf32, #tpu.memory_space<vmem>>, vector<16x96xf32>
    %c0_2 = arith.constant 0 : index
    %c0_3 = arith.constant 0 : index
    %4 = vector.load %arg3[%c0_2, %c0_3] : memref<16x32xf32, #tpu.memory_space<vmem>>, vector<16x32xf32>
    %c0_4 = arith.constant 0 : index
    %c0_5 = arith.constant 0 : index
    %5 = vector.load %arg4[%c0_4, %c0_5] : memref<32x96xf32, #tpu.memory_space<vmem>>, vector<32x96xf32>
    %cst = arith.constant dense<0.000000e+00> : vector<16x96xf32>
    %6 = tpu.matmul %4, %5, %cst {dimension_numbers = #tpu.dot_dimension_numbers<[1], [0], [0], [1], [0, 0, 1, 1], [], []>} : vector<16x32xf32>, vector<32x96xf32>, vector<16x96xf32> -> vector<16x96xf32>
    %7 = arith.addf %3, %6 : vector<16x96xf32>
    %c0_6 = arith.constant 0 : index
    %c0_7 = arith.constant 0 : index
    %8 = vector.load %arg6[%c0_6, %c0_7] : memref<16x96xf32, #tpu.memory_space<vmem>>, vector<16x96xf32>
    tpu.vector_store %arg6[%c0_6, %c0_7], %7 {strides = array<i32>} : memref<16x96xf32, #tpu.memory_space<vmem>>, vector<16x96xf32>,
    %c0_i32_8 = arith.constant 0 : i32
    %9 = arith.cmpi eq, %arg2, %c0_i32_8 : i32
    %10 = arith.extui %9 : i1 to i32
    %c0_i32_9 = arith.constant 0 : i32
    %11 = arith.cmpi ne, %10, %c0_i32_9 : i32
    scf.if %11 {
      %c0_10 = arith.constant 0 : index
      %c0_11 = arith.constant 0 : index
      %12 = vector.load %arg6[%c0_10, %c0_11] : memref<16x96xf32, #tpu.memory_space<vmem>>, vector<16x96xf32>
      %c0_12 = arith.constant 0 : index
      %c0_13 = arith.constant 0 : index
      %13 = vector.load %arg5[%c0_12, %c0_13] : memref<16x96xf32, #tpu.memory_space<vmem>>, vector<16x96xf32>
      tpu.vector_store %arg5[%c0_12, %c0_13], %12 {strides = array<i32>} : memref<16x96xf32, #tpu.memory_space<vmem>>, vector<16x96xf32>,
    } else {
    }
    return
  }
  func.func @transform_0(%arg0: i32, %arg1: i32, %arg2: i32) -> (i32, i32) {
    %c0_i32 = arith.constant 0 : i32
    return %arg0, %arg2 : i32, i32
  }
  func.func @transform_1(%arg0: i32, %arg1: i32, %arg2: i32) -> (i32, i32) {
    %c0_i32 = arith.constant 0 : i32
    return %arg2, %arg1 : i32, i32
  }
  func.func @transform_2(%arg0: i32, %arg1: i32, %arg2: i32) -> (i32, i32) {
    %c0_i32 = arith.constant 0 : i32
    return %arg0, %arg1 : i32, i32
  }
}

</mosaic_0001>

<llo_original>
// kernel: tpu_custom_call.1
$region0: #{tpu_custom_call.1}
  #allocation0 [shape = 'u32[]', space=smem, size = 0x4, offset = 0x4, fixed_abs, tag = 'smem constant byte address 0x4 - core index']
  #allocation1 [shape = 'u32[144,128]{1,0:T(1,128)}', space=vmem, size = 0x12000, scoped, tag = 'internal scratch']
  #allocation2 [shape = 'f32[16,96]{1,0:T(8,128)}', space=vmem, size = 0x2000, scoped, tag = 'scratch operand']
  %s0 = inlined_call_operand.hbm [shape: f32[16,32], index: 0, kind: input, shape index: {}]
  %s1 = inlined_call_operand.hbm [shape: f32[32,96], index: 1, kind: input, shape index: {}]
  %s2 = inlined_call_operand.hbm [shape: f32[16,96], index: 2, kind: output, shape index: {}]
  %s3 = sld [smem:[#allocation0]]
  $region34: #{tpu_custom_call.1} parent=0
    _
  %s5 = ssub.s32 1, %s3
  %s6 = scalar_select 0, %s5, %s3
  $region1: #{tpu_custom_call.1} parent=0
    #allocation3 [shape = 'u8[8192]{0}', space=vmem, size = 0x2000, scoped, tag = 'input window, operand 0, single buffered']
    #allocation4 [shape = 's32[1]{0}', space=sflag, size = 0x4, scoped, tag = 'scoped memory for tpu_custom_call.1']
    #allocation5 [shape = 's32[1]{0}', space=sflag, size = 0x4, scoped, tag = 'scoped memory for tpu_custom_call.1']
    #allocation6 [shape = 'u8[16384]{0}', space=vmem, size = 0x4000, scoped, tag = 'input window, operand 1, single buffered']
    #allocation7 [shape = 's32[1]{0}', space=sflag, size = 0x4, scoped, tag = 'scoped memory for tpu_custom_call.1']
    #allocation8 [shape = 'u8[8192]{0}', space=vmem, size = 0x2000, scoped, tag = 'output window, operand 0, single buffered']
    %7 = vsyncpa [#allocation4], 0
    %8 = vsyncpa [#allocation7], 0
    %9 = vsyncpa [#allocation5], 0
    // Predicated region
    $region2: #{tpu_custom_call.1} parent=1 // pred_check
      _
    $region3: #{tpu_custom_call.1} parent=1 // pred_check_branch
      %11 = sbr.rel (0) target = $region5
    $region4: #{tpu_custom_call.1} parent=1 // pred_region
      %s13 = ssub.s32 256, 256
      %14 = vsyncadd [#allocation4], %s13
      %s15 = sshll.u32 [#allocation3], 4
      %s16 = int_to_ptr.vmem [resolvable:$true] %s15
      %21 = dma.hbm_to_vmem [thread:$0]  %s0, 256, %s16, [#allocation4], 128, 128, 8
    $region5: #{tpu_custom_call.1} parent=1 // pred_fallthru
      _
    // Predicated region
    $region6: #{tpu_custom_call.1} parent=1 // pred_check
      _
    $region7: #{tpu_custom_call.1} parent=1 // pred_check_branch
      %23 = sbr.rel (0) target = $region9
    $region8: #{tpu_custom_call.1} parent=1 // pred_region
      %s25 = ssub.s32 512, 512
      %26 = vsyncadd [#allocation7], %s25
      %s27 = sshll.u32 [#allocation6], 4
      %s28 = int_to_ptr.vmem [resolvable:$true] %s27
      %33 = dma.hbm_to_vmem [thread:$0]  %s1, 512, %s28, [#allocation7], 128, 128, 8
    $region9: #{tpu_custom_call.1} parent=1 // pred_fallthru
      _
    // Predicated region
    $region10: #{tpu_custom_call.1} parent=1 // pred_check
      _
    $region11: #{tpu_custom_call.1} parent=1 // pred_check_branch
      %35 = sbr.rel (0) target = $region13
    $region12: #{tpu_custom_call.1} parent=1 // pred_region
      %36 = dma.done [#allocation4], 256
    $region13: #{tpu_custom_call.1} parent=1 // pred_fallthru
      _
    // Predicated region
    $region14: #{tpu_custom_call.1} parent=1 // pred_check
      _
    $region15: #{tpu_custom_call.1} parent=1 // pred_check_branch
      %38 = sbr.rel (0) target = $region17
    $region16: #{tpu_custom_call.1} parent=1 // pred_region
      %39 = dma.done [#allocation7], 512
    $region17: #{tpu_custom_call.1} parent=1 // pred_fallthru
      _
    %p40 = scmp.eq.s32.totalorder 0, 0
    // Predicated region
    $region18: #{tpu_custom_call.1} parent=1 // pred_check
      %p41 = pneg %p40
    $region19: #{tpu_custom_call.1} parent=1 // pred_check_branch
      %43 = sbr.rel (%p41) target = $region21
    $region20: #{tpu_custom_call.1} parent=1 // pred_region
      %vm44 = vcmask 785408
      %45 = vst.msk [vmem:[#allocation2] sm:$0xff] %vm44, 0.0
      %46 = vst.msk [vmem:[#allocation2 + $0x8] sm:$0xff] %vm44, 0.0
    $region21: #{tpu_custom_call.1} parent=1 // pred_fallthru
      _
    %v47 = vld [vmem:[#allocation2] sm:$0xff]
    %v48 = vld [vmem:[#allocation2 + $0x8] sm:$0xff]
    %v49 = vld [vmem:[#allocation3] sm:$0xff]
    %v50 = vld [vmem:[#allocation3 + $0x8] sm:$0xff]
    %v51 = vld [vmem:[#allocation6] sm:$0xff]
    %v52 = vld [vmem:[#allocation6 + $0x8] sm:$0xff]
    %v53 = vld [vmem:[#allocation6 + $0x10] sm:$0xff]
    %v54 = vld [vmem:[#allocation6 + $0x18] sm:$0xff]
    %vm55 = vcmask 261120
    %v57 = vsel %vm55, %v49, 0
    %v60 = vsel %vm55, %v50, 0
    %62 = vmatprep.subr.mxu0 0.0
    %63 = vmatpush1.msra.mxu0 %v51
    %64 = vmatprep.subr.mxu0 0.0
    %65 = vmatpush1.msra.mxu0 %v52
    %66 = vmatprep.subr.mxu0 0.0
    %67 = vmatpush1.msra.mxu0 %v53
    %68 = vmatprep.subr.mxu0 0.0
    %69 = vmatpush1.msra.mxu0 %v54
    %70 = vmatprep.subr.mxu0 0.0
    %71 = vmatpush1.msra.mxu0 0.0
    %72 = vmatprep.subr.mxu0 0.0
    %73 = vmatpush1.msra.mxu0 0.0
    %74 = vmatprep.subr.mxu0 0.0
    %75 = vmatpush1.msra.mxu0 0.0
    %76 = vmatprep.subr.mxu0 0.0
    %77 = vmatpush1.msra.mxu0 0.0
    %78 = vmatprep.subr.mxu0 0.0
    %79 = vmatpush1.msra.mxu0 0.0
    %80 = vmatprep.subr.mxu0 0.0
    %81 = vmatpush1.msra.mxu0 0.0
    %82 = vmatprep.subr.mxu0 0.0
    %83 = vmatpush1.msra.mxu0 0.0
    %84 = vmatprep.subr.mxu0 0.0
    %85 = vmatpush1.msra.mxu0 0.0
    %86 = vmatprep.subr.mxu0 0.0
    %87 = vmatpush1.msra.mxu0 0.0
    %88 = vmatprep.subr.mxu0 0.0
    %89 = vmatpush1.msra.mxu0 0.0
    %90 = vmatprep.subr.mxu0 0.0
    %91 = vmatpush1.msra.mxu0 0.0
    %92 = vmatprep.subr.mxu0 0.0
    %93 = vmatpush1.msra.mxu0 0.0
    %94 = vmatprep.subr.mxu0 0.0
    %95 = vmatpush1.msra.mxu0 0.0
    %96 = vmatprep.subr.mxu0 0.0
    %97 = vmatpush1.msra.mxu0 0.0
    %98 = vmatprep.subr.mxu0 0.0
    %99 = vmatpush1.msra.mxu0 0.0
    %100 = vmatprep.subr.mxu0 0.0
    %101 = vmatpush1.msra.mxu0 0.0
    %102 = vmatprep.subr.mxu0 0.0
    %103 = vmatpush1.msra.mxu0 0.0
    %104 = vmatprep.subr.mxu0 0.0
    %105 = vmatpush1.msra.mxu0 0.0
    %106 = vmatprep.subr.mxu0 0.0
    %107 = vmatpush1.msra.mxu0 0.0
    %108 = vmatprep.subr.mxu0 0.0
    %109 = vmatpush1.msra.mxu0 0.0
    %110 = vmatprep.subr.mxu0 0.0
    %111 = vmatpush1.msra.mxu0 0.0
    %112 = vmatprep.subr.mxu0 0.0
    %113 = vmatpush1.msra.mxu0 0.0
    %114 = vmatprep.subr.mxu0 0.0
    %115 = vmatpush1.msra.mxu0 0.0
    %116 = vmatprep.subr.mxu0 0.0
    %117 = vmatpush1.msra.mxu0 0.0
    %118 = vmatprep.subr.mxu0 0.0
    %119 = vmatpush1.msra.mxu0 0.0
    %120 = vmatprep.subr.mxu0 0.0
    %121 = vmatpush1.msra.mxu0 0.0
    %122 = vmatprep.subr.mxu0 0.0
    %123 = vmatpush1.msra.mxu0 0.0
    %124 = vmatprep.subr.mxu0 0.0
    %125 = vmatpush1.msra.mxu0 0.0
    %126 = vmatprep.mubr.f32.mxu0 0.0
    %127 = vmatmul.mubr.f32.gmra.mrb[0].mxu0 %v57
    %v128 = vpop.f32.mrb[0].mxu0
    %v129 = vadd.f32 0.0, %v128
    %v130 = vpop.f32.mrb[0].mxu0
    %131 = vmatprep.mubr.f32.mxu0 0.0
    %132 = vmatmul.mubr.f32.gmra.mrb[0].mxu0 %v60
    %v133 = vpop.f32.mrb[0].mxu0
    %v134 = vadd.f32 0.0, %v133
    %v135 = vpop.f32.mrb[0].mxu0
    %136 = vdwg.mxu0
    %v137 = vadd.f32 %v47, %v129
    %v138 = vadd.f32 %v48, %v134
    %vm139 = vcmask 785408
    %140 = vst.msk [vmem:[#allocation2] sm:$0xff] %vm139, %v137
    %141 = vst.msk [vmem:[#allocation2 + $0x8] sm:$0xff] %vm139, %v138
    // Predicated region
    $region22: #{tpu_custom_call.1} parent=1 // pred_check
      %p142 = pneg %p40
    $region23: #{tpu_custom_call.1} parent=1 // pred_check_branch
      %144 = sbr.rel (%p142) target = $region25
    $region24: #{tpu_custom_call.1} parent=1 // pred_region
      %v145 = vld [vmem:[#allocation2] sm:$0xff]
      %v146 = vld [vmem:[#allocation2 + $0x8] sm:$0xff]
      %147 = vst.msk [vmem:[#allocation8] sm:$0xff] %vm139, %v145
      %148 = vst.msk [vmem:[#allocation8 + $0x8] sm:$0xff] %vm139, %v146
    $region25: #{tpu_custom_call.1} parent=1 // pred_fallthru
      _
    // Predicated region
    $region26: #{tpu_custom_call.1} parent=1 // pred_check
      _
    $region27: #{tpu_custom_call.1} parent=1 // pred_check_branch
      %150 = sbr.rel (0) target = $region29
    $region28: #{tpu_custom_call.1} parent=1 // pred_region
      %s152 = ssub.s32 256, 256
      %153 = vsyncadd [#allocation5], %s152
      %s154 = sshll.u32 [#allocation8], 4
      %s155 = int_to_ptr.vmem [resolvable:$true] %s154
      %160 = dma.vmem_to_hbm [thread:$0]  %s155, 256, %s2, [#allocation5], 128, 128, 8
    $region29: #{tpu_custom_call.1} parent=1 // pred_fallthru
      _
    // Predicated region
    $region30: #{tpu_custom_call.1} parent=1 // pred_check
      _
    $region31: #{tpu_custom_call.1} parent=1 // pred_check_branch
      %162 = sbr.rel (0) target = $region33
    $region32: #{tpu_custom_call.1} parent=1 // pred_region
      %163 = dma.done [#allocation5], 256
    $region33: #{tpu_custom_call.1} parent=1 // pred_fallthru
      _
    %164 = vsyncpa [#allocation4], 1
    %165 = vsyncpa [#allocation7], 1
    %166 = vsyncpa [#allocation5], 1

</llo_original>
